<compile_context>
chip_gen: v7x
topology: tpu7x:2x2x1
jax: 0.10.0
libtpu: 0.0.40
codegen_flags: <defaults>
</compile_context>

<pallas_src>
import functools

import jax
import jax.numpy as jnp
from jax.experimental import pallas as pl
from jax.experimental.pallas import tpu as pltpu

LEAKY_SLOPE = 0.2
BN_EPS = 1e-5
LANE = 128


def _round_up(x, m):
    return (x + m - 1) // m * m


@functools.lru_cache(maxsize=1)
def _vmem_limit_bytes():
    """Generation-aware VMEM budget (v5e/v6e: 128 MiB physical, v7x: 64 MiB)."""
    try:
        cap = int(pltpu.get_tpu_info().vmem_capacity_bytes)
    except Exception:
        cap = 64 * 1024 * 1024
    return int(min(cap // 2, 64 * 1024 * 1024))


def _choose_tiles(m, k):
    """M tile: <=256, multiple of 8. K tile: <=1152, divides K exactly."""
    m_pad = _round_up(m, 8)
    tm = min(256, m_pad)
    m_pad = _round_up(m_pad, tm)
    tk = k if k <= 1152 else 1152
    assert k % tk == 0, (k, tk)
    return m_pad, tm, tk


# ---------------------------------------------------------------------------
# Kernels
# ---------------------------------------------------------------------------

def _conv_bn_stats_kernel(a_ref, w_ref, y_ref, stats_ref, acc_ref):
    """bf16 matmul -> f32 accumulator; at the last K step emit the pre-BN
    activations plus per-M-tile partial (sum, sum_sq) channel statistics."""
    k = pl.program_id(1)

    @pl.when(k == 0)
    def _():
        acc_ref[...] = jnp.zeros_like(acc_ref)

    acc_ref[...] += jnp.dot(a_ref[...], w_ref[...],
                            preferred_element_type=jnp.float32)

    @pl.when(k == pl.num_programs(1) - 1)
    def _():
        acc = acc_ref[...]
        y_ref[...] = acc.astype(y_ref.dtype)
        s = jnp.sum(acc, axis=0, keepdims=True)            # (1, C)
        ss = jnp.sum(acc * acc, axis=0, keepdims=True)     # (1, C)
        rows = jax.lax.broadcasted_iota(jnp.int32, stats_ref.shape, 0)
        stats_ref[...] = jnp.where(rows == 0, s, jnp.where(rows == 1, ss, 0.0))


def _make_conv_bias_act_kernel(use_act):
    """bf16 matmul -> f32 accumulator; fused bias (+LeakyReLU) at last K step."""
    def kernel(a_ref, w_ref, b_ref, o_ref, acc_ref):
        k = pl.program_id(1)

        @pl.when(k == 0)
        def _():
            acc_ref[...] = jnp.zeros_like(acc_ref)

        acc_ref[...] += jnp.dot(a_ref[...], w_ref[...],
                                preferred_element_type=jnp.float32)

        @pl.when(k == pl.num_programs(1) - 1)
        def _():
            y = acc_ref[...] + b_ref[...]
            if use_act:
                y = jnp.where(y > 0, y, LEAKY_SLOPE * y)
            o_ref[...] = y.astype(o_ref.dtype)

    return kernel


def _bn_act_kernel(y_ref, scale_ref, shift_ref, o_ref):
    """Single-FMA BatchNorm (precomputed scale/shift) + LeakyReLU(0.2)."""
    z = y_ref[...] * scale_ref[...] + shift_ref[...]
    o_ref[...] = jnp.where(z > 0, z, LEAKY_SLOPE * z).astype(o_ref.dtype)


# ---------------------------------------------------------------------------
# pallas_call wrappers
# ---------------------------------------------------------------------------

def conv_matmul_bn_stats(a, w, *, tm, tk):
    mp, kk = a.shape
    _, cp = w.shape
    nm, nk = mp // tm, kk // tk
    return pl.pallas_call(
        _conv_bn_stats_kernel,
        out_shape=(jax.ShapeDtypeStruct((mp, cp), jnp.float32),
                   jax.ShapeDtypeStruct((nm * 8, cp), jnp.float32)),
        grid_spec=pltpu.PrefetchScalarGridSpec(
            num_scalar_prefetch=0,
            grid=(nm, nk),
            in_specs=[pl.BlockSpec((tm, tk), lambda i, k: (i, k)),
                      pl.BlockSpec((tk, cp), lambda i, k: (k, 0))],
            out_specs=[pl.BlockSpec((tm, cp), lambda i, k: (i, 0)),
                       pl.BlockSpec((8, cp), lambda i, k: (i, 0))],
            scratch_shapes=[pltpu.VMEM((tm, cp), jnp.float32)]),
        compiler_params=pltpu.CompilerParams(
            dimension_semantics=("parallel", "arbitrary"),
            vmem_limit_bytes=_vmem_limit_bytes()),
    )(a, w)


def conv_matmul_bias(a, w, b, *, tm, tk, use_act):
    mp, kk = a.shape
    _, cp = w.shape
    nm, nk = mp // tm, kk // tk
    return pl.pallas_call(
        _make_conv_bias_act_kernel(use_act),
        out_shape=jax.ShapeDtypeStruct((mp, cp), jnp.float32),
        grid_spec=pltpu.PrefetchScalarGridSpec(
            num_scalar_prefetch=0,
            grid=(nm, nk),
            in_specs=[pl.BlockSpec((tm, tk), lambda i, k: (i, k)),
                      pl.BlockSpec((tk, cp), lambda i, k: (k, 0)),
                      pl.BlockSpec((1, cp), lambda i, k: (0, 0))],
            out_specs=pl.BlockSpec((tm, cp), lambda i, k: (i, 0)),
            scratch_shapes=[pltpu.VMEM((tm, cp), jnp.float32)]),
        compiler_params=pltpu.CompilerParams(
            dimension_semantics=("parallel", "arbitrary"),
            vmem_limit_bytes=_vmem_limit_bytes()),
    )(a, w, b)


def bn_act_apply(y, scale, shift, *, tm):
    mp, cp = y.shape
    nm = mp // tm
    return pl.pallas_call(
        _bn_act_kernel,
        out_shape=jax.ShapeDtypeStruct((mp, cp), jnp.float32),
        grid_spec=pltpu.PrefetchScalarGridSpec(
            num_scalar_prefetch=0,
            grid=(nm,),
            in_specs=[pl.BlockSpec((tm, cp), lambda i: (i, 0)),
                      pl.BlockSpec((1, cp), lambda i: (0, 0)),
                      pl.BlockSpec((1, cp), lambda i: (0, 0))],
            out_specs=pl.BlockSpec((tm, cp), lambda i: (i, 0))),
        compiler_params=pltpu.CompilerParams(
            dimension_semantics=("parallel",),
            vmem_limit_bytes=_vmem_limit_bytes()),
    )(y, scale, shift)


# ---------------------------------------------------------------------------
# Glue: im2col, parameters, forward
# ---------------------------------------------------------------------------

def im2col(x_nhwc, stride):
    """3x3, padding=1 im2col. Returns (N*Ho*Wo, 9*C) and (N, Ho, Wo)."""
    n, h, w, c = x_nhwc.shape
    xp = jnp.pad(x_nhwc, ((0, 0), (1, 1), (1, 1), (0, 0)))
    ho = (h + 2 - 3) // stride + 1
    wo = (w + 2 - 3) // stride + 1
    cols = []
    for ky in range(3):
        for kx in range(3):
            sl = xp[:, ky: ky + (ho - 1) * stride + 1: stride,
                       kx: kx + (wo - 1) * stride + 1: stride, :]
            cols.append(sl)
    patches = jnp.concatenate(cols, axis=-1)          # (N, Ho, Wo, 9*C)
    return patches.reshape(n * ho * wo, 9 * c), (n, ho, wo)


def build_layer_defs(in_channels):
    defs = []
    cin = in_channels
    for i, cout in enumerate([64, 128, 256, 512]):
        defs.append(dict(cin=cin, cout=cout, stride=1, bn=(i != 0), act=True))
        defs.append(dict(cin=cout, cout=cout, stride=2, bn=True, act=True))
        cin = cout
    defs.append(dict(cin=cin, cout=1, stride=1, bn=False, act=False))
    return defs


def init_params(key, in_channels):
    """Deterministic synthetic parameters. Weights are generated in torch
    (kH,kW,Cin,Cout) layout, then zero-padded to the lane-dense padded channel
    counts and reshaped to matmul layout (9*Cin_pad, Cout_pad) in bfloat16."""
    params = []
    cin_pad = in_channels                      # raw image channels, unpadded
    for ld in build_layer_defs(in_channels):
        cin, cout = ld["cin"], ld["cout"]
        cout_pad = _round_up(cout, LANE)
        key, kw, kb, kg, kbe = jax.random.split(key, 5)
        fan_in = 9 * cin
        w = jax.random.normal(kw, (3, 3, cin, cout), jnp.float32) / jnp.sqrt(
            jnp.float32(fan_in))
        b = 0.01 * jax.random.normal(kb, (cout,), jnp.float32)
        if ld["bn"]:
            gamma = 1.0 + 0.1 * jax.random.normal(kg, (cout,), jnp.float32)
            beta = 0.1 * jax.random.normal(kbe, (cout,), jnp.float32)
        else:
            gamma = jnp.ones((cout,), jnp.float32)
            beta = jnp.zeros((cout,), jnp.float32)
        # zero-pad input channels (to match the padded activation from the
        # previous layer) and output channels (lane-dense, multiple of 128)
        w_pad = jnp.zeros((3, 3, cin_pad, cout_pad), jnp.float32)
        w_pad = w_pad.at[:, :, :cin, :cout].set(w)
        w_mm = w_pad.reshape(9 * cin_pad, cout_pad).astype(jnp.bfloat16)

        def pad1(v):
            return jnp.pad(v, (0, cout_pad - cout))[None, :]

        params.append(dict(w=w_mm, b=pad1(b), gamma=pad1(gamma),
                           beta=pad1(beta), cout_pad=cout_pad, **ld))
        cin_pad = cout_pad
    return params


def discriminator_forward(x_nchw, params):
    """Input: NCHW (like PyTorch). Output: NCHW, shape (N, 1, H/16, W/16)."""
    x = jnp.transpose(x_nchw, (0, 2, 3, 1)).astype(jnp.float32)   # -> NHWC
    for p in params:
        a, (n, ho, wo) = im2col(x, p["stride"])
        m_true, kk = a.shape
        cp = p["cout_pad"]
        m_pad, tm, tk = _choose_tiles(m_true, kk)
        a = a.astype(jnp.bfloat16)                       # bf16 MXU inputs
        if m_pad != m_true:
            a = jnp.pad(a, ((0, m_pad - m_true), (0, 0)))

        if p["bn"]:
            # pass 1: matmul + per-tile partial channel stats (bias dropped:
            # it cancels exactly in the BN mean subtraction)
            y, stats = conv_matmul_bn_stats(a, p["w"], tm=tm, tk=tk)
            nm = m_pad // tm
            stats = stats.reshape(nm, 8, cp)
            total = jnp.sum(stats[:, 0, :], axis=0, keepdims=True)     # (1, C)
            total_sq = jnp.sum(stats[:, 1, :], axis=0, keepdims=True)  # (1, C)
            mean = total / m_true            # padded rows are exact zeros
            var = jnp.maximum(total_sq / m_true - mean * mean, 0.0)
            scale = p["gamma"] * jax.lax.rsqrt(var + BN_EPS)
            shift = p["beta"] - mean * scale
            # pass 2: single-FMA normalize + LeakyReLU, tiled over M
            y = bn_act_apply(y, scale, shift, tm=tm)
        else:
            y = conv_matmul_bias(a, p["w"], p["b"], tm=tm, tk=tk,
                                 use_act=p["act"])

        x = y[:m_true].reshape(n, ho, wo, cp)

    x = x[..., :1]                                        # drop channel padding
    return jnp.transpose(x, (0, 3, 1, 2))                 # -> NCHW


if __name__ == "__main__":
    key = jax.random.PRNGKey(0)
    key_x, key_p = jax.random.split(key)

    # input_shape = (C, H, W) = (4, 16, 16); batch = 2
    N, C, H, W = 2, 4, 16, 16
    x = jax.random.normal(key_x, (N, C, H, W), jnp.float32)
    params = init_params(key_p, C)

    out = discriminator_forward(x, params)
    out = jax.block_until_ready(out)

    expected_shape = (N, 1, H // 16, W // 16)   # module.output_shape with batch
    assert out.shape == expected_shape, (out.shape, expected_shape)
    assert bool(jnp.all(jnp.isfinite(out)))
    print("KERNEL_OK")
</pallas_src>

<mosaic_0001>
module attributes {stable_mosaic.version = 11 : i64} {
  func.func @kernel(%arg0: i32, %arg1: i32, %arg2: memref<256x36xbf16, #tpu.memory_space<vmem>>, %arg3: memref<36x128xbf16, #tpu.memory_space<vmem>>, %arg4: memref<1x128xf32, #tpu.memory_space<vmem>>, %arg5: memref<256x128xf32, #tpu.memory_space<vmem>>, %arg6: memref<256x128xf32, #tpu.memory_space<vmem>>) attributes {dimension_semantics = [#tpu.dimension_semantics<parallel>, #tpu.dimension_semantics<arbitrary>], iteration_bounds = array<i64: 2, 1>, scalar_prefetch = 0 : i64, scratch_operands = 1 : i64, tpu.core_type = #tpu.core_type<tc>, window_params = [{transform_indices = @transform_0, window_bounds = array<i64: 256, 36>}, {transform_indices = @transform_1, window_bounds = array<i64: 36, 128>}, {pipeline_mode = #tpu.pipeline_mode<synchronous>, transform_indices = @transform_2, window_bounds = array<i64: 1, 128>}, {transform_indices = @transform_3, window_bounds = array<i64: 256, 128>}]} {
    %c0_i32 = arith.constant 0 : i32
    %0 = arith.cmpi eq, %arg1, %c0_i32 : i32
    %1 = arith.extui %0 : i1 to i32
    %c0_i32_0 = arith.constant 0 : i32
    %2 = arith.cmpi ne, %1, %c0_i32_0 : i32
    scf.if %2 {
      %cst_10 = arith.constant 0.000000e+00 : f32
      %12 = vector.broadcast %cst_10 : f32 to vector<256x128xf32>
      %c0_11 = arith.constant 0 : index
      %c0_12 = arith.constant 0 : index
      %13 = vector.load %arg6[%c0_11, %c0_12] : memref<256x128xf32, #tpu.memory_space<vmem>>, vector<256x128xf32>
      tpu.vector_store %arg6[%c0_11, %c0_12], %12 {strides = array<i32>} : memref<256x128xf32, #tpu.memory_space<vmem>>, vector<256x128xf32>,
    } else {
    }
    %c0 = arith.constant 0 : index
    %c0_1 = arith.constant 0 : index
    %3 = vector.load %arg6[%c0, %c0_1] : memref<256x128xf32, #tpu.memory_space<vmem>>, vector<256x128xf32>
    %c0_2 = arith.constant 0 : index
    %c0_3 = arith.constant 0 : index
    %4 = vector.load %arg2[%c0_2, %c0_3] : memref<256x36xbf16, #tpu.memory_space<vmem>>, vector<256x36xbf16>
    %c0_4 = arith.constant 0 : index
    %c0_5 = arith.constant 0 : index
    %5 = vector.load %arg3[%c0_4, %c0_5] : memref<36x128xbf16, #tpu.memory_space<vmem>>, vector<36x128xbf16>
    %cst = arith.constant dense<0.000000e+00> : vector<256x128xf32>
    %6 = tpu.matmul %4, %5, %cst {dimension_numbers = #tpu.dot_dimension_numbers<[1], [0], [0], [1], [0, 0, 1, 1], [], []>} : vector<256x36xbf16>, vector<36x128xbf16>, vector<256x128xf32> -> vector<256x128xf32>
    %7 = arith.addf %3, %6 : vector<256x128xf32>
    %c0_6 = arith.constant 0 : index
    %c0_7 = arith.constant 0 : index
    %8 = vector.load %arg6[%c0_6, %c0_7] : memref<256x128xf32, #tpu.memory_space<vmem>>, vector<256x128xf32>
    tpu.vector_store %arg6[%c0_6, %c0_7], %7 {strides = array<i32>} : memref<256x128xf32, #tpu.memory_space<vmem>>, vector<256x128xf32>,
    %c0_i32_8 = arith.constant 0 : i32
    %9 = arith.cmpi eq, %arg1, %c0_i32_8 : i32
    %10 = arith.extui %9 : i1 to i32
    %c0_i32_9 = arith.constant 0 : i32
    %11 = arith.cmpi ne, %10, %c0_i32_9 : i32
    scf.if %11 {
      %c0_10 = arith.constant 0 : index
      %c0_11 = arith.constant 0 : index
      %12 = vector.load %arg6[%c0_10, %c0_11] : memref<256x128xf32, #tpu.memory_space<vmem>>, vector<256x128xf32>
      %c0_12 = arith.constant 0 : index
      %c0_13 = arith.constant 0 : index
      %13 = vector.load %arg4[%c0_12, %c0_13] : memref<1x128xf32, #tpu.memory_space<vmem>>, vector<1x128xf32>
      %14 = vector.broadcast %13 : vector<1x128xf32> to vector<256x128xf32>
      %15 = arith.addf %12, %14 : vector<256x128xf32>
      %cst_14 = arith.constant 0.000000e+00 : f32
      %16 = vector.broadcast %cst_14 : f32 to vector<256x128xf32>
      %17 = arith.cmpf ogt, %15, %16 : vector<256x128xf32>
      %cst_15 = arith.constant 2.000000e-01 : f32
      %18 = vector.broadcast %cst_15 : f32 to vector<256x128xf32>
      %19 = arith.mulf %18, %15 : vector<256x128xf32>
      %20 = arith.select %17, %15, %19 : vector<256x128xi1>, vector<256x128xf32>
      %c0_16 = arith.constant 0 : index
      %c0_17 = arith.constant 0 : index
      %21 = vector.load %arg5[%c0_16, %c0_17] : memref<256x128xf32, #tpu.memory_space<vmem>>, vector<256x128xf32>
      tpu.vector_store %arg5[%c0_16, %c0_17], %20 {strides = array<i32>} : memref<256x128xf32, #tpu.memory_space<vmem>>, vector<256x128xf32>,
    } else {
    }
    return
  }
  func.func @transform_0(%arg0: i32, %arg1: i32) -> (i32, i32) {
    %c0_i32 = arith.constant 0 : i32
    return %arg0, %arg1 : i32, i32
  }
  func.func @transform_1(%arg0: i32, %arg1: i32) -> (i32, i32) {
    %c0_i32 = arith.constant 0 : i32
    %c0_i32_0 = arith.constant 0 : i32
    return %arg1, %c0_i32 : i32, i32
  }
  func.func @transform_2(%arg0: i32, %arg1: i32) -> (i32, i32) {
    %c0_i32 = arith.constant 0 : i32
    %c0_i32_0 = arith.constant 0 : i32
    %c0_i32_1 = arith.constant 0 : i32
    return %c0_i32, %c0_i32_0 : i32, i32
  }
  func.func @transform_3(%arg0: i32, %arg1: i32) -> (i32, i32) {
    %c0_i32 = arith.constant 0 : i32
    %c0_i32_0 = arith.constant 0 : i32
    return %arg0, %c0_i32 : i32, i32
  }
}

</mosaic_0001>

<llo_original>
// kernel: tpu_custom_call.1
$region0: #{tpu_custom_call.1}
  #allocation0 [shape = 'u32[]', space=smem, size = 0x4, offset = 0x4, fixed_abs, tag = 'smem constant byte address 0x4 - core index']
  #allocation1 [shape = 'u32[144,128]{1,0:T(1,128)}', space=vmem, size = 0x12000, scoped, tag = 'internal scratch']
  #allocation2 [shape = 'f32[256,128]{1,0:T(8,128)}', space=vmem, size = 0x20000, scoped, tag = 'scratch operand']
  %s0 = inlined_call_operand.vmem [shape: bf16[512,36], index: 0, kind: input, shape index: {}]
  %s1 = inlined_call_operand.vmem [shape: bf16[36,128], index: 1, kind: input, shape index: {}]
  %s2 = inlined_call_operand.vmem [shape: f32[1,128], index: 2, kind: input, shape index: {}]
  %s3 = inlined_call_operand.hbm [shape: f32[512,128], index: 3, kind: output, shape index: {}]
  %s4 = sld [smem:[#allocation0]]
  $region53: #{tpu_custom_call.1} parent=0
    _
  %s6 = ssub.s32 1, %s4
  %s7 = scalar_select 0, %s6, %s4
  $region1: #{tpu_custom_call.1} parent=0
    #allocation3 [shape = 'u8[262144]{0}', space=vmem, size = 0x40000, scoped, tag = 'output window, operand 0']
    #allocation4 [shape = 's32[2]{0}', space=sflag, size = 0x8, scoped, tag = 'scoped memory for tpu_custom_call.1']
    %8 = vsyncpa [#allocation4], 0
    %s9 = scalar_lea.sflag [#allocation4], 1
    %10 = vsyncpa %s9, 0
    loop: start=0, step=1, limit=4
    $region2: #{tpu_custom_call.1} parent=1 // loop_pre_header
      _
    $region3: #{tpu_custom_call.1} parent=1 // loop_header
      %s12 = sphi 0, %s16
      %p13 = scmp.ge.s32.totalorder %s12, 4
      %s19 = sphi 0, %s31
      %s20 = sphi 0, %s27
      %s21 = sphi 0, %s19
      %s22 = sphi 0, %s20
      %s23 = sphi 0, %s21
      %s24 = sphi 0, %s22
      %s36 = sphi 0, %s38
      %s39 = sphi 0, %s36
      %s40 = sphi 0, %s39
      %s56 = sphi 0, %s40
      %s62 = sphi 0, %s64
      %s65 = sphi 0, %s62
      %s66 = sphi 0, %s65
      %s82 = sphi 0, %s66
      %s86 = sphi 0, %s86
      %s88 = sphi 0, %s86
      %s89 = sphi 0, %s88
      %s103 = sphi 0, %s89
      %s109 = sphi 0, %s111
      %s112 = sphi 0, %s109
      %s113 = sphi 0, %s112
      %s129 = sphi 0, %s113
    $region4: #{tpu_custom_call.1} parent=1 // loop_header_branch
      %15 = sbr.rel (%p13) target = $region8
    $region5: #{tpu_custom_call.1} parent=1 // loop_body
      %s17 = ssub.s32 %s12, 1
      %s18 = ssub.s32 %s12, 2
      %s25 = sadd.s32 1, %s20
      %p26 = scmp.ge.s32.totalorder %s25, 1
      %s27 = scalar_select %p26, 0, %s25
      %s28 = sadd.s32 1, %s19
      %s29 = scalar_select %p26, %s28, %s19
      %p30 = scmp.ge.s32.totalorder %s29, 2
      %s31 = scalar_select %p30, 0, %s29
      %s32 = ssub.s32 %s19, %s31
      %s33 = ssub.s32 %s20, %s27
      %s34 = sor.u32 %s32, %s33
      %p35 = scmp.eq.s32.totalorder %s34, 0
      %s37 = sadd.s32 %s36, 1
      %s38 = scalar_select %p35, %s36, %s37
      %p41 = pneg %p35
      %p42 = scmp.eq.s32.totalorder %s12, 1
      %p43 = por %p41, %p42
      %p44 = scmp.ne.s32.totalorder %s36, %s39
      %p45 = scmp.eq.s32.totalorder %s12, 0
      %p46 = por %p44, %p45
      %p47 = scmp.ne.s32.totalorder %s36, %s39
      %p48 = scmp.eq.s32.totalorder %s17, 1
      %p49 = por %p47, %p48
      %p50 = scmp.ne.s32.totalorder %s39, %s40
      %p51 = scmp.eq.s32.totalorder %s17, 0
      %p52 = por %p50, %p51
      %p53 = scmp.ne.s32.totalorder %s39, %s40
      %p54 = scmp.eq.s32.totalorder %s18, 1
      %p55 = por %p53, %p54
      %p57 = scmp.ne.s32.totalorder %s40, %s56
      %p58 = scmp.eq.s32.totalorder %s18, 0
      %p59 = por %p57, %p58
      %s60 = ssub.s32 %s20, %s27
      %p61 = scmp.eq.s32.totalorder %s60, 0
      %s63 = sadd.s32 %s62, 1
      %s64 = scalar_select %p61, %s62, %s63
      %p67 = pneg %p61
      %p68 = scmp.eq.s32.totalorder %s12, 1
      %p69 = por %p67, %p68
      %p70 = scmp.ne.s32.totalorder %s62, %s65
      %p71 = scmp.eq.s32.totalorder %s12, 0
      %p72 = por %p70, %p71
      %p73 = scmp.ne.s32.totalorder %s62, %s65
      %p74 = scmp.eq.s32.totalorder %s17, 1
      %p75 = por %p73, %p74
      %p76 = scmp.ne.s32.totalorder %s65, %s66
      %p77 = scmp.eq.s32.totalorder %s17, 0
      %p78 = por %p76, %p77
      %p79 = scmp.ne.s32.totalorder %s65, %s66
      %p80 = scmp.eq.s32.totalorder %s18, 1
      %p81 = por %p79, %p80
      %p83 = scmp.ne.s32.totalorder %s66, %s82
      %p84 = scmp.eq.s32.totalorder %s18, 0
      %p85 = por %p83, %p84
      %s87 = sadd.s32 %s86, 1
      %p90 = scmp.eq.s32.totalorder %s12, 1
      %p91 = scmp.ne.s32.totalorder %s86, %s88
      %p92 = scmp.eq.s32.totalorder %s12, 0
      %p93 = por %p91, %p92
      %p94 = scmp.ne.s32.totalorder %s86, %s88
      %p95 = scmp.eq.s32.totalorder %s17, 1
      %p96 = por %p94, %p95
      %p97 = scmp.ne.s32.totalorder %s88, %s89
      %p98 = scmp.eq.s32.totalorder %s17, 0
      %p99 = por %p97, %p98
      %p100 = scmp.ne.s32.totalorder %s88, %s89
      %p101 = scmp.eq.s32.totalorder %s18, 1
      %p102 = por %p100, %p101
      %p104 = scmp.ne.s32.totalorder %s89, %s103
      %p105 = scmp.eq.s32.totalorder %s18, 0
      %p106 = por %p104, %p105
      %s107 = ssub.s32 %s19, %s31
      %p108 = scmp.eq.s32.totalorder %s107, 0
      %s110 = sadd.s32 %s109, 1
      %s111 = scalar_select %p108, %s109, %s110
      %p114 = pneg %p108
      %p115 = scmp.eq.s32.totalorder %s12, 1
      %p116 = por %p114, %p115
      %p117 = scmp.ne.s32.totalorder %s109, %s112
      %p118 = scmp.eq.s32.totalorder %s12, 0
      %p119 = por %p117, %p118
      %p120 = scmp.ne.s32.totalorder %s109, %s112
      %p121 = scmp.eq.s32.totalorder %s17, 1
      %p122 = por %p120, %p121
      %p123 = scmp.ne.s32.totalorder %s112, %s113
      %p124 = scmp.eq.s32.totalorder %s17, 0
      %p125 = por %p123, %p124
      %p126 = scmp.ne.s32.totalorder %s112, %s113
      %p127 = scmp.eq.s32.totalorder %s18, 1
      %p128 = por %p126, %p127
      %p130 = scmp.ne.s32.totalorder %s113, %s129
      %p131 = scmp.eq.s32.totalorder %s18, 0
      %p132 = por %p130, %p131
      %p133 = scmp.le.s32.totalorder 1, %s12
      %p134 = scmp.lt.s32.totalorder %s12, 3
      %p135 = pnand %p133, %p134
      %p136 = pneg %p135
      // Predicated region
      $region9: #{tpu_custom_call.1} parent=5 // pred_check
        _
      $region10: #{tpu_custom_call.1} parent=5 // pred_check_branch
        %138 = sbr.rel (%p135) target = $region12
      $region11: #{tpu_custom_call.1} parent=5 // pred_region
        %s139 = ssub.s32 %s12, 1
        // Predicated region
        $region13: #{tpu_custom_call.1} parent=11 // pred_check
          %p140 = pneg %p78
        $region14: #{tpu_custom_call.1} parent=11 // pred_check_branch
          %142 = sbr.rel (%p140) target = $region16
        $region15: #{tpu_custom_call.1} parent=11 // pred_region
          %s143 = smul.u32 5, %s22
          %p144 = scmp.lt.s32.totalorder %s143, 4
          %s145 = scalar_select %p144, %s143, 4
          %s146 = smul.addr %s145, 4
          %s147 = scalar_lea.vmem %s1, %s146
          %s148 = smul.u32 5, %s22
        $region16: #{tpu_custom_call.1} parent=11 // pred_fallthru
          _
        // Predicated region
        $region17: #{tpu_custom_call.1} parent=11 // pred_check
          %p149 = pneg %p99
        $region18: #{tpu_custom_call.1} parent=11 // pred_check_branch
          %151 = sbr.rel (%p149) target = $region20
        $region19: #{tpu_custom_call.1} parent=11 // pred_region
          _
        $region20: #{tpu_custom_call.1} parent=11 // pred_fallthru
          _
      $region12: #{tpu_custom_call.1} parent=5 // pred_fallthru
        _
      %p152 = scmp.lt.s32.totalorder %s12, 2
      // Predicated region
      $region21: #{tpu_custom_call.1} parent=5 // pred_check
        %p153 = pneg %p152
      $region22: #{tpu_custom_call.1} parent=5 // pred_check_branch
        %155 = sbr.rel (%p153) target = $region24
      $region23: #{tpu_custom_call.1} parent=5 // pred_region
        // Predicated region
        $region25: #{tpu_custom_call.1} parent=23 // pred_check
          %p156 = pneg %p46
        $region26: #{tpu_custom_call.1} parent=23 // pred_check_branch
          %158 = sbr.rel (%p156) target = $region28
        $region27: #{tpu_custom_call.1} parent=23 // pred_region
          %s159 = smul.u32 32, %s19
          %p160 = scmp.lt.s32.totalorder %s159, 63
          %s161 = scalar_select %p160, %s159, 63
          %p162 = scmp.lt.s32.totalorder %s20, 0
          %s163 = scalar_select %p162, %s20, 0
          %s164 = sadd.s32 %s163, %s161
          %s165 = smul.addr %s164, 4
          %s166 = scalar_lea.vmem %s0, %s165
          %s167 = smul.u32 32, %s19
        $region28: #{tpu_custom_call.1} parent=23 // pred_fallthru
          _
      $region24: #{tpu_custom_call.1} parent=5 // pred_fallthru
        _
      %p168 = scmp.le.s32.totalorder 1, %s12
      %p169 = scmp.lt.s32.totalorder %s12, 3
      %p170 = pnand %p168, %p169
      %p171 = pneg %p170
      // Predicated region
      $region29: #{tpu_custom_call.1} parent=5 // pred_check
        _
      $region30: #{tpu_custom_call.1} parent=5 // pred_check_branch
        %173 = sbr.rel (%p170) target = $region32
      $region31: #{tpu_custom_call.1} parent=5 // pred_region
        %s174 = ssub.s32 %s12, 1
        %s175 = smul.u32 32, %s21
        %p176 = scmp.lt.s32.totalorder %s175, 63
        %s177 = scalar_select %p176, %s175, 63
        %p178 = scmp.lt.s32.totalorder %s22, 0
        %s179 = scalar_select %p178, %s22, 0
        %s180 = sadd.s32 %s179, %s177
        %s181 = smul.addr %s180, 4
        %s182 = scalar_lea.vmem %s0, %s181
        %p183 = pneg %p52
        %p184 = pneg %p49
        %s185 = smul.u32 5, %s22
        %p186 = scmp.lt.s32.totalorder %s185, 4
        %s187 = scalar_select %p186, %s185, 4
        %s188 = smul.addr %s187, 4
        %s189 = scalar_lea.vmem %s1, %s188
        %p190 = pneg %p78
        %p191 = pneg %p75
        %p192 = pneg %p99
        %p193 = pneg %p96
        %p194 = pneg %p125
        %p195 = pneg %p122
        %s196 = sand.u32 %s112, 1
        %s197 = scalar_lea.sflag [#allocation4], %s196
        %s198 = sand.u32 %s112, 1
        %s199 = smul.addr %s198, 256
        %s200 = scalar_lea.vmem [#allocation3], %s199
        %s201 = smul.u32 32, %s21
        %p202 = scmp.lt.s32.totalorder %s201, 63
        %s203 = scalar_select %p202, %s201, 63
        %p204 = scmp.lt.s32.totalorder %s22, 0
        %s205 = scalar_select %p204, %s22, 0
        %s206 = sadd.s32 %s205, %s203
        %s207 = smul.addr %s206, 4
        %s208 = scalar_lea.vmem %s0, %s207
        %s209 = smul.u32 32, %s21
        %s210 = smul.u32 5, %s22
        %p211 = scmp.lt.s32.totalorder %s210, 4
        %s212 = scalar_select %p211, %s210, 4
        %s213 = smul.addr %s212, 4
        %s214 = scalar_lea.vmem %s1, %s213
        %s215 = smul.u32 5, %s22
        %s216 = smul.u32 32, %s21
        %p218 = scmp.eq.s32.totalorder %s22, 0
        // Predicated region
        $region33: #{tpu_custom_call.1} parent=31 // pred_check
          %p219 = pneg %p218
        $region34: #{tpu_custom_call.1} parent=31 // pred_check_branch
          %221 = sbr.rel (%p219) target = $region36
        $region35: #{tpu_custom_call.1} parent=31 // pred_region
          %222 = vst [vmem:[#allocation2] sm:$0xff] 0.0
          %223 = vst [vmem:[#allocation2 + $0x8] sm:$0xff] 0.0
          %224 = vst [vmem:[#allocation2 + $0x10] sm:$0xff] 0.0
          %225 = vst [vmem:[#allocation2 + $0x18] sm:$0xff] 0.0
          %226 = vst [vmem:[#allocation2 + $0x20] sm:$0xff] 0.0
          %227 = vst [vmem:[#allocation2 + $0x28] sm:$0xff] 0.0
          %228 = vst [vmem:[#allocation2 + $0x30] sm:$0xff] 0.0
          %229 = vst [vmem:[#allocation2 + $0x38] sm:$0xff] 0.0
          %230 = vst [vmem:[#allocation2 + $0x40] sm:$0xff] 0.0
          %231 = vst [vmem:[#allocation2 + $0x48] sm:$0xff] 0.0
          %232 = vst [vmem:[#allocation2 + $0x50] sm:$0xff] 0.0
          %233 = vst [vmem:[#allocation2 + $0x58] sm:$0xff] 0.0
          %234 = vst [vmem:[#allocation2 + $0x60] sm:$0xff] 0.0
          %235 = vst [vmem:[#allocation2 + $0x68] sm:$0xff] 0.0
          %236 = vst [vmem:[#allocation2 + $0x70] sm:$0xff] 0.0
          %237 = vst [vmem:[#allocation2 + $0x78] sm:$0xff] 0.0
          %238 = vst [vmem:[#allocation2 + $0x80] sm:$0xff] 0.0
          %239 = vst [vmem:[#allocation2 + $0x88] sm:$0xff] 0.0
          %240 = vst [vmem:[#allocation2 + $0x90] sm:$0xff] 0.0
          %241 = vst [vmem:[#allocation2 + $0x98] sm:$0xff] 0.0
          %242 = vst [vmem:[#allocation2 + $0xa0] sm:$0xff] 0.0
          %243 = vst [vmem:[#allocation2 + $0xa8] sm:$0xff] 0.0
          %244 = vst [vmem:[#allocation2 + $0xb0] sm:$0xff] 0.0
          %245 = vst [vmem:[#allocation2 + $0xb8] sm:$0xff] 0.0
          %246 = vst [vmem:[#allocation2 + $0xc0] sm:$0xff] 0.0
          %247 = vst [vmem:[#allocation2 + $0xc8] sm:$0xff] 0.0
          %248 = vst [vmem:[#allocation2 + $0xd0] sm:$0xff] 0.0
          %249 = vst [vmem:[#allocation2 + $0xd8] sm:$0xff] 0.0
          %250 = vst [vmem:[#allocation2 + $0xe0] sm:$0xff] 0.0
          %251 = vst [vmem:[#allocation2 + $0xe8] sm:$0xff] 0.0
          %252 = vst [vmem:[#allocation2 + $0xf0] sm:$0xff] 0.0
          %253 = vst [vmem:[#allocation2 + $0xf8] sm:$0xff] 0.0
        $region36: #{tpu_custom_call.1} parent=31 // pred_fallthru
          _
        %v254 = vld [vmem:[#allocation2] sm:$0xff]
        %v255 = vld [vmem:[#allocation2 + $0x8] sm:$0xff]
        %v256 = vld [vmem:[#allocation2 + $0x10] sm:$0xff]
        %v257 = vld [vmem:[#allocation2 + $0x18] sm:$0xff]
        %v258 = vld [vmem:[#allocation2 + $0x20] sm:$0xff]
        %v259 = vld [vmem:[#allocation2 + $0x28] sm:$0xff]
        %v260 = vld [vmem:[#allocation2 + $0x30] sm:$0xff]
        %v261 = vld [vmem:[#allocation2 + $0x38] sm:$0xff]
        %v262 = vld [vmem:[#allocation2 + $0x40] sm:$0xff]
        %v263 = vld [vmem:[#allocation2 + $0x48] sm:$0xff]
        %v264 = vld [vmem:[#allocation2 + $0x50] sm:$0xff]
        %v265 = vld [vmem:[#allocation2 + $0x58] sm:$0xff]
        %v266 = vld [vmem:[#allocation2 + $0x60] sm:$0xff]
        %v267 = vld [vmem:[#allocation2 + $0x68] sm:$0xff]
        %v268 = vld [vmem:[#allocation2 + $0x70] sm:$0xff]
        %v269 = vld [vmem:[#allocation2 + $0x78] sm:$0xff]
        %v270 = vld [vmem:[#allocation2 + $0x80] sm:$0xff]
        %v271 = vld [vmem:[#allocation2 + $0x88] sm:$0xff]
        %v272 = vld [vmem:[#allocation2 + $0x90] sm:$0xff]
        %v273 = vld [vmem:[#allocation2 + $0x98] sm:$0xff]
        %v274 = vld [vmem:[#allocation2 + $0xa0] sm:$0xff]
        %v275 = vld [vmem:[#allocation2 + $0xa8] sm:$0xff]
        %v276 = vld [vmem:[#allocation2 + $0xb0] sm:$0xff]
        %v277 = vld [vmem:[#allocation2 + $0xb8] sm:$0xff]
        %v278 = vld [vmem:[#allocation2 + $0xc0] sm:$0xff]
        %v279 = vld [vmem:[#allocation2 + $0xc8] sm:$0xff]
        %v280 = vld [vmem:[#allocation2 + $0xd0] sm:$0xff]
        %v281 = vld [vmem:[#allocation2 + $0xd8] sm:$0xff]
        %v282 = vld [vmem:[#allocation2 + $0xe0] sm:$0xff]
        %v283 = vld [vmem:[#allocation2 + $0xe8] sm:$0xff]
        %v284 = vld [vmem:[#allocation2 + $0xf0] sm:$0xff]
        %v285 = vld [vmem:[#allocation2 + $0xf8] sm:$0xff]
        %v286 = vld [vmem:[%s208] sm:$0xf]
        %v287 = vld [vmem:[%s208 + $0x4] sm:$0xf]
        %v288 = vld [vmem:[%s208 + $0x8] sm:$0xf]
        %v289 = vld [vmem:[%s208 + $0xc] sm:$0xf]
        %v290 = vld [vmem:[%s208 + $0x10] sm:$0xf]
        %v291 = vld [vmem:[%s208 + $0x14] sm:$0xf]
        %v292 = vld [vmem:[%s208 + $0x18] sm:$0xf]
        %v293 = vld [vmem:[%s208 + $0x1c] sm:$0xf]
        %v294 = vld [vmem:[%s208 + $0x20] sm:$0xf]
        %v295 = vld [vmem:[%s208 + $0x24] sm:$0xf]
        %v296 = vld [vmem:[%s208 + $0x28] sm:$0xf]
        %v297 = vld [vmem:[%s208 + $0x2c] sm:$0xf]
        %v298 = vld [vmem:[%s208 + $0x30] sm:$0xf]
        %v299 = vld [vmem:[%s208 + $0x34] sm:$0xf]
        %v300 = vld [vmem:[%s208 + $0x38] sm:$0xf]
        %v301 = vld [vmem:[%s208 + $0x3c] sm:$0xf]
        %v302 = vld [vmem:[%s208 + $0x40] sm:$0xf]
        %v303 = vld [vmem:[%s208 + $0x44] sm:$0xf]
        %v304 = vld [vmem:[%s208 + $0x48] sm:$0xf]
        %v305 = vld [vmem:[%s208 + $0x4c] sm:$0xf]
        %v306 = vld [vmem:[%s208 + $0x50] sm:$0xf]
        %v307 = vld [vmem:[%s208 + $0x54] sm:$0xf]
        %v308 = vld [vmem:[%s208 + $0x58] sm:$0xf]
        %v309 = vld [vmem:[%s208 + $0x5c] sm:$0xf]
        %v310 = vld [vmem:[%s208 + $0x60] sm:$0xf]
        %v311 = vld [vmem:[%s208 + $0x64] sm:$0xf]
        %v312 = vld [vmem:[%s208 + $0x68] sm:$0xf]
        %v313 = vld [vmem:[%s208 + $0x6c] sm:$0xf]
        %v314 = vld [vmem:[%s208 + $0x70] sm:$0xf]
        %v315 = vld [vmem:[%s208 + $0x74] sm:$0xf]
        %v316 = vld [vmem:[%s208 + $0x78] sm:$0xf]
        %v317 = vld [vmem:[%s208 + $0x7c] sm:$0xf]
        %v318 = vld [vmem:[%s214] sm:$0xf]
        %v319 = vld [vmem:[%s214 + $0x4] sm:$0xf]
        %v320 = vld [vmem:[%s214 + $0x8] sm:$0xf]
        %v321 = vld [vmem:[%s214 + $0xc] sm:$0xf]
        %v322 = vld [vmem:[%s214 + $0x10] sm:$0x3]
        %v355 = vunpack.c.l.b16 %v286
        %v356 = vunpack.c.l.b16 %v287
        %v357 = vunpack.c.l.b16 %v288
        %v358 = vunpack.c.l.b16 %v289
        %v359 = vunpack.c.l.b16 %v290
        %v360 = vunpack.c.l.b16 %v291
        %v361 = vunpack.c.l.b16 %v292
        %v362 = vunpack.c.l.b16 %v293
        %v363 = vunpack.c.l.b16 %v294
        %v364 = vunpack.c.l.b16 %v295
        %v365 = vunpack.c.l.b16 %v296
        %v366 = vunpack.c.l.b16 %v297
        %v367 = vunpack.c.l.b16 %v298
        %v368 = vunpack.c.l.b16 %v299
        %v369 = vunpack.c.l.b16 %v300
        %v370 = vunpack.c.l.b16 %v301
        %v371 = vunpack.c.l.b16 %v302
        %v372 = vunpack.c.l.b16 %v303
        %v373 = vunpack.c.l.b16 %v304
        %v374 = vunpack.c.l.b16 %v305
        %v375 = vunpack.c.l.b16 %v306
        %v376 = vunpack.c.l.b16 %v307
        %v377 = vunpack.c.l.b16 %v308
        %v378 = vunpack.c.l.b16 %v309
        %v379 = vunpack.c.l.b16 %v310
        %v380 = vunpack.c.l.b16 %v311
        %v381 = vunpack.c.l.b16 %v312
        %v382 = vunpack.c.l.b16 %v313
        %v383 = vunpack.c.l.b16 %v314
        %v384 = vunpack.c.l.b16 %v315
        %v385 = vunpack.c.l.b16 %v316
        %v386 = vunpack.c.l.b16 %v317
        %v387 = vpack.c.b16 %v356, %v355
        %v388 = vpack.c.b16 %v358, %v357
        %v389 = vpack.c.b16 %v360, %v359
        %v390 = vpack.c.b16 %v362, %v361
        %v391 = vpack.c.b16 %v364, %v363
        %v392 = vpack.c.b16 %v366, %v365
        %v393 = vpack.c.b16 %v368, %v367
        %v394 = vpack.c.b16 %v370, %v369
        %v395 = vpack.c.b16 %v372, %v371
        %v396 = vpack.c.b16 %v374, %v373
        %v397 = vpack.c.b16 %v376, %v375
        %v398 = vpack.c.b16 %v378, %v377
        %v399 = vpack.c.b16 %v380, %v379
        %v400 = vpack.c.b16 %v382, %v381
        %v401 = vpack.c.b16 %v384, %v383
        %v402 = vpack.c.b16 %v386, %v385
        %v408 = vunpack.c.l.b16 %v318
        %v409 = vunpack.c.l.b16 %v319
        %v410 = vunpack.c.l.b16 %v320
        %v411 = vunpack.c.l.b16 %v321
        %v412 = vunpack.c.l.b16 %v322
        %v413 = vpack.c.b16 %v409, %v408
        %v414 = vpack.c.b16 %v411, %v410
        %v415 = vpack.c.b16 %v412, %v412
        %vm418 = vcmask 293888
        %v420 = vsel %vm418, %v387, 0
        %v423 = vsel %vm418, %v388, 0
        %v426 = vsel %vm418, %v389, 0
        %v429 = vsel %vm418, %v390, 0
        %v432 = vsel %vm418, %v391, 0
        %v435 = vsel %vm418, %v392, 0
        %v438 = vsel %vm418, %v393, 0
        %v441 = vsel %vm418, %v394, 0
        %v444 = vsel %vm418, %v395, 0
        %v447 = vsel %vm418, %v396, 0
        %v450 = vsel %vm418, %v397, 0
        %v453 = vsel %vm418, %v398, 0
        %v456 = vsel %vm418, %v399, 0
        %v459 = vsel %vm418, %v400, 0
        %v462 = vsel %vm418, %v401, 0
        %v465 = vsel %vm418, %v402, 0
        %vm467 = vcmask 1041408
        %v469 = vsel %vm467, %v415, 0
        %471 = vmatprep.subr.bf16.mxu0 0
        %472 = vmatpush1.bf16.msra.mxu0 %v413
        %473 = vmatprep.subr.bf16.mxu0 0
        %474 = vmatpush1.bf16.msra.mxu0 %v414
        %475 = vmatprep.subr.bf16.mxu0 0
        %476 = vmatpush1.bf16.msra.mxu0 %v469
        %477 = vmatprep.subr.bf16.mxu0 0
        %478 = vmatpush1.bf16.msra.mxu0 0
        %479 = vmatprep.subr.bf16.mxu0 0
        %480 = vmatpush1.bf16.msra.mxu0 0
        %481 = vmatprep.subr.bf16.mxu0 0
        %482 = vmatpush1.bf16.msra.mxu0 0
        %483 = vmatprep.subr.bf16.mxu0 0
        %484 = vmatpush1.bf16.msra.mxu0 0
        %485 = vmatprep.subr.bf16.mxu0 0
        %486 = vmatpush1.bf16.msra.mxu0 0
        %487 = vmatprep.subr.bf16.mxu0 0
        %488 = vmatpush1.bf16.msra.mxu0 0
        %489 = vmatprep.subr.bf16.mxu0 0
        %490 = vmatpush1.bf16.msra.mxu0 0
        %491 = vmatprep.subr.bf16.mxu0 0
        %492 = vmatpush1.bf16.msra.mxu0 0
        %493 = vmatprep.subr.bf16.mxu0 0
        %494 = vmatpush1.bf16.msra.mxu0 0
        %495 = vmatprep.subr.bf16.mxu0 0
        %496 = vmatpush1.bf16.msra.mxu0 0
        %497 = vmatprep.subr.bf16.mxu0 0
        %498 = vmatpush1.bf16.msra.mxu0 0
        %499 = vmatprep.subr.bf16.mxu0 0
        %500 = vmatpush1.bf16.msra.mxu0 0
        %501 = vmatprep.subr.bf16.mxu0 0
        %502 = vmatpush1.bf16.msra.mxu0 0
        %503 = vmatprep.mubr.bf16.mxu0 0
        %504 = vmatmul.mubr.bf16.gmra.mrb[0].mxu0 %v420
        %v505 = vpop.f32.mrb[0].mxu0
        %v506 = vadd.f32 0.0, %v505
        %v507 = vpop.f32.mrb[0].mxu0
        %v508 = vpop.f32.mrb[0].mxu0
        %v509 = vadd.f32 0.0, %v508
        %v510 = vpop.f32.mrb[0].mxu0
        %511 = vmatprep.mubr.bf16.mxu0 0
        %512 = vmatmul.mubr.bf16.gmra.mrb[0].mxu0 %v423
        %v513 = vpop.f32.mrb[0].mxu0
        %v514 = vadd.f32 0.0, %v513
        %v515 = vpop.f32.mrb[0].mxu0
        %v516 = vpop.f32.mrb[0].mxu0
        %v517 = vadd.f32 0.0, %v516
        %v518 = vpop.f32.mrb[0].mxu0
        %519 = vmatprep.mubr.bf16.mxu0 0
        %520 = vmatmul.mubr.bf16.gmra.mrb[0].mxu0 %v426
        %v521 = vpop.f32.mrb[0].mxu0
        %v522 = vadd.f32 0.0, %v521
        %v523 = vpop.f32.mrb[0].mxu0
        %v524 = vpop.f32.mrb[0].mxu0
        %v525 = vadd.f32 0.0, %v524
        %v526 = vpop.f32.mrb[0].mxu0
        %527 = vmatprep.mubr.bf16.mxu0 0
        %528 = vmatmul.mubr.bf16.gmra.mrb[0].mxu0 %v429
        %v529 = vpop.f32.mrb[0].mxu0
        %v530 = vadd.f32 0.0, %v529
        %v531 = vpop.f32.mrb[0].mxu0
        %v532 = vpop.f32.mrb[0].mxu0
        %v533 = vadd.f32 0.0, %v532
        %v534 = vpop.f32.mrb[0].mxu0
        %535 = vmatprep.mubr.bf16.mxu0 0
        %536 = vmatmul.mubr.bf16.gmra.mrb[0].mxu0 %v432
        %v537 = vpop.f32.mrb[0].mxu0
        %v538 = vadd.f32 0.0, %v537
        %v539 = vpop.f32.mrb[0].mxu0
        %v540 = vpop.f32.mrb[0].mxu0
        %v541 = vadd.f32 0.0, %v540
        %v542 = vpop.f32.mrb[0].mxu0
        %543 = vmatprep.mubr.bf16.mxu0 0
        %544 = vmatmul.mubr.bf16.gmra.mrb[0].mxu0 %v435
        %v545 = vpop.f32.mrb[0].mxu0
        %v546 = vadd.f32 0.0, %v545
        %v547 = vpop.f32.mrb[0].mxu0
        %v548 = vpop.f32.mrb[0].mxu0
        %v549 = vadd.f32 0.0, %v548
        %v550 = vpop.f32.mrb[0].mxu0
        %551 = vmatprep.mubr.bf16.mxu0 0
        %552 = vmatmul.mubr.bf16.gmra.mrb[0].mxu0 %v438
        %v553 = vpop.f32.mrb[0].mxu0
        %v554 = vadd.f32 0.0, %v553
        %v555 = vpop.f32.mrb[0].mxu0
        %v556 = vpop.f32.mrb[0].mxu0
        %v557 = vadd.f32 0.0, %v556
        %v558 = vpop.f32.mrb[0].mxu0
        %559 = vmatprep.mubr.bf16.mxu0 0
        %560 = vmatmul.mubr.bf16.gmra.mrb[0].mxu0 %v441
        %v561 = vpop.f32.mrb[0].mxu0
        %v562 = vadd.f32 0.0, %v561
        %v563 = vpop.f32.mrb[0].mxu0
        %v564 = vpop.f32.mrb[0].mxu0
        %v565 = vadd.f32 0.0, %v564
        %v566 = vpop.f32.mrb[0].mxu0
        %567 = vmatprep.mubr.bf16.mxu0 0
        %568 = vmatmul.mubr.bf16.gmra.mrb[0].mxu0 %v444
        %v569 = vpop.f32.mrb[0].mxu0
        %v570 = vadd.f32 0.0, %v569
        %v571 = vpop.f32.mrb[0].mxu0
        %v572 = vpop.f32.mrb[0].mxu0
        %v573 = vadd.f32 0.0, %v572
        %v574 = vpop.f32.mrb[0].mxu0
        %575 = vmatprep.mubr.bf16.mxu0 0
        %576 = vmatmul.mubr.bf16.gmra.mrb[0].mxu0 %v447
        %v577 = vpop.f32.mrb[0].mxu0
        %v578 = vadd.f32 0.0, %v577
        %v579 = vpop.f32.mrb[0].mxu0
        %v580 = vpop.f32.mrb[0].mxu0
        %v581 = vadd.f32 0.0, %v580
        %v582 = vpop.f32.mrb[0].mxu0
        %583 = vmatprep.mubr.bf16.mxu0 0
        %584 = vmatmul.mubr.bf16.gmra.mrb[0].mxu0 %v450
        %v585 = vpop.f32.mrb[0].mxu0
        %v586 = vadd.f32 0.0, %v585
        %v587 = vpop.f32.mrb[0].mxu0
        %v588 = vpop.f32.mrb[0].mxu0
        %v589 = vadd.f32 0.0, %v588
        %v590 = vpop.f32.mrb[0].mxu0
        %591 = vmatprep.mubr.bf16.mxu0 0
        %592 = vmatmul.mubr.bf16.gmra.mrb[0].mxu0 %v453
        %v593 = vpop.f32.mrb[0].mxu0
        %v594 = vadd.f32 0.0, %v593
        %v595 = vpop.f32.mrb[0].mxu0
        %v596 = vpop.f32.mrb[0].mxu0
        %v597 = vadd.f32 0.0, %v596
        %v598 = vpop.f32.mrb[0].mxu0
        %599 = vmatprep.mubr.bf16.mxu0 0
        %600 = vmatmul.mubr.bf16.gmra.mrb[0].mxu0 %v456
        %v601 = vpop.f32.mrb[0].mxu0
        %v602 = vadd.f32 0.0, %v601
        %v603 = vpop.f32.mrb[0].mxu0
        %v604 = vpop.f32.mrb[0].mxu0
        %v605 = vadd.f32 0.0, %v604
        %v606 = vpop.f32.mrb[0].mxu0
        %607 = vmatprep.mubr.bf16.mxu0 0
        %608 = vmatmul.mubr.bf16.gmra.mrb[0].mxu0 %v459
        %v609 = vpop.f32.mrb[0].mxu0
        %v610 = vadd.f32 0.0, %v609
        %v611 = vpop.f32.mrb[0].mxu0
        %v612 = vpop.f32.mrb[0].mxu0
        %v613 = vadd.f32 0.0, %v612
        %v614 = vpop.f32.mrb[0].mxu0
        %615 = vmatprep.mubr.bf16.mxu0 0
        %616 = vmatmul.mubr.bf16.gmra.mrb[0].mxu0 %v462
        %v617 = vpop.f32.mrb[0].mxu0
        %v618 = vadd.f32 0.0, %v617
        %v619 = vpop.f32.mrb[0].mxu0
        %v620 = vpop.f32.mrb[0].mxu0
        %v621 = vadd.f32 0.0, %v620
        %v622 = vpop.f32.mrb[0].mxu0
        %623 = vmatprep.mubr.bf16.mxu0 0
        %624 = vmatmul.mubr.bf16.gmra.mrb[0].mxu0 %v465
        %v625 = vpop.f32.mrb[0].mxu0
        %v626 = vadd.f32 0.0, %v625
        %v627 = vpop.f32.mrb[0].mxu0
        %v628 = vpop.f32.mrb[0].mxu0
        %v629 = vadd.f32 0.0, %v628
        %v630 = vpop.f32.mrb[0].mxu0
        %631 = vdwg.mxu0
        %v632 = vadd.f32 %v254, %v506
        %v633 = vadd.f32 %v255, %v509
        %v634 = vadd.f32 %v256, %v514
        %v635 = vadd.f32 %v257, %v517
        %v636 = vadd.f32 %v258, %v522
        %v637 = vadd.f32 %v259, %v525
        %v638 = vadd.f32 %v260, %v530
        %v639 = vadd.f32 %v261, %v533
        %v640 = vadd.f32 %v262, %v538
        %v641 = vadd.f32 %v263, %v541
        %v642 = vadd.f32 %v264, %v546
        %v643 = vadd.f32 %v265, %v549
        %v644 = vadd.f32 %v266, %v554
        %v645 = vadd.f32 %v267, %v557
        %v646 = vadd.f32 %v268, %v562
        %v647 = vadd.f32 %v269, %v565
        %v648 = vadd.f32 %v270, %v570
        %v649 = vadd.f32 %v271, %v573
        %v650 = vadd.f32 %v272, %v578
        %v651 = vadd.f32 %v273, %v581
        %v652 = vadd.f32 %v274, %v586
        %v653 = vadd.f32 %v275, %v589
        %v654 = vadd.f32 %v276, %v594
        %v655 = vadd.f32 %v277, %v597
        %v656 = vadd.f32 %v278, %v602
        %v657 = vadd.f32 %v279, %v605
        %v658 = vadd.f32 %v280, %v610
        %v659 = vadd.f32 %v281, %v613
        %v660 = vadd.f32 %v282, %v618
        %v661 = vadd.f32 %v283, %v621
        %v662 = vadd.f32 %v284, %v626
        %v663 = vadd.f32 %v285, %v629
        %664 = vst [vmem:[#allocation2] sm:$0xff] %v632
        %665 = vst [vmem:[#allocation2 + $0x8] sm:$0xff] %v633
        %666 = vst [vmem:[#allocation2 + $0x10] sm:$0xff] %v634
        %667 = vst [vmem:[#allocation2 + $0x18] sm:$0xff] %v635
        %668 = vst [vmem:[#allocation2 + $0x20] sm:$0xff] %v636
        %669 = vst [vmem:[#allocation2 + $0x28] sm:$0xff] %v637
        %670 = vst [vmem:[#allocation2 + $0x30] sm:$0xff] %v638
        %671 = vst [vmem:[#allocation2 + $0x38] sm:$0xff] %v639
        %672 = vst [vmem:[#allocation2 + $0x40] sm:$0xff] %v640
        %673 = vst [vmem:[#allocation2 + $0x48] sm:$0xff] %v641
        %674 = vst [vmem:[#allocation2 + $0x50] sm:$0xff] %v642
        %675 = vst [vmem:[#allocation2 + $0x58] sm:$0xff] %v643
        %676 = vst [vmem:[#allocation2 + $0x60] sm:$0xff] %v644
        %677 = vst [vmem:[#allocation2 + $0x68] sm:$0xff] %v645
        %678 = vst [vmem:[#allocation2 + $0x70] sm:$0xff] %v646
        %679 = vst [vmem:[#allocation2 + $0x78] sm:$0xff] %v647
        %680 = vst [vmem:[#allocation2 + $0x80] sm:$0xff] %v648
        %681 = vst [vmem:[#allocation2 + $0x88] sm:$0xff] %v649
        %682 = vst [vmem:[#allocation2 + $0x90] sm:$0xff] %v650
        %683 = vst [vmem:[#allocation2 + $0x98] sm:$0xff] %v651
        %684 = vst [vmem:[#allocation2 + $0xa0] sm:$0xff] %v652
        %685 = vst [vmem:[#allocation2 + $0xa8] sm:$0xff] %v653
        %686 = vst [vmem:[#allocation2 + $0xb0] sm:$0xff] %v654
        %687 = vst [vmem:[#allocation2 + $0xb8] sm:$0xff] %v655
        %688 = vst [vmem:[#allocation2 + $0xc0] sm:$0xff] %v656
        %689 = vst [vmem:[#allocation2 + $0xc8] sm:$0xff] %v657
        %690 = vst [vmem:[#allocation2 + $0xd0] sm:$0xff] %v658
        %691 = vst [vmem:[#allocation2 + $0xd8] sm:$0xff] %v659
        %692 = vst [vmem:[#allocation2 + $0xe0] sm:$0xff] %v660
        %693 = vst [vmem:[#allocation2 + $0xe8] sm:$0xff] %v661
        %694 = vst [vmem:[#allocation2 + $0xf0] sm:$0xff] %v662
        %695 = vst [vmem:[#allocation2 + $0xf8] sm:$0xff] %v663
        // Predicated region
        $region37: #{tpu_custom_call.1} parent=31 // pred_check
          %p696 = pneg %p218
        $region38: #{tpu_custom_call.1} parent=31 // pred_check_branch
          %698 = sbr.rel (%p696) target = $region40
        $region39: #{tpu_custom_call.1} parent=31 // pred_region
          %v699 = vld [vmem:[#allocation2] sm:$0xff]
          %v700 = vld [vmem:[#allocation2 + $0x8] sm:$0xff]
          %v701 = vld [vmem:[#allocation2 + $0x10] sm:$0xff]
          %v702 = vld [vmem:[#allocation2 + $0x18] sm:$0xff]
          %v703 = vld [vmem:[#allocation2 + $0x20] sm:$0xff]
          %v704 = vld [vmem:[#allocation2 + $0x28] sm:$0xff]
          %v705 = vld [vmem:[#allocation2 + $0x30] sm:$0xff]
          %v706 = vld [vmem:[#allocation2 + $0x38] sm:$0xff]
          %v707 = vld [vmem:[#allocation2 + $0x40] sm:$0xff]
          %v708 = vld [vmem:[#allocation2 + $0x48] sm:$0xff]
          %v709 = vld [vmem:[#allocation2 + $0x50] sm:$0xff]
          %v710 = vld [vmem:[#allocation2 + $0x58] sm:$0xff]
          %v711 = vld [vmem:[#allocation2 + $0x60] sm:$0xff]
          %v712 = vld [vmem:[#allocation2 + $0x68] sm:$0xff]
          %v713 = vld [vmem:[#allocation2 + $0x70] sm:$0xff]
          %v714 = vld [vmem:[#allocation2 + $0x78] sm:$0xff]
          %v715 = vld [vmem:[#allocation2 + $0x80] sm:$0xff]
          %v716 = vld [vmem:[#allocation2 + $0x88] sm:$0xff]
          %v717 = vld [vmem:[#allocation2 + $0x90] sm:$0xff]
          %v718 = vld [vmem:[#allocation2 + $0x98] sm:$0xff]
          %v719 = vld [vmem:[#allocation2 + $0xa0] sm:$0xff]
          %v720 = vld [vmem:[#allocation2 + $0xa8] sm:$0xff]
          %v721 = vld [vmem:[#allocation2 + $0xb0] sm:$0xff]
          %v722 = vld [vmem:[#allocation2 + $0xb8] sm:$0xff]
          %v723 = vld [vmem:[#allocation2 + $0xc0] sm:$0xff]
          %v724 = vld [vmem:[#allocation2 + $0xc8] sm:$0xff]
          %v725 = vld [vmem:[#allocation2 + $0xd0] sm:$0xff]
          %v726 = vld [vmem:[#allocation2 + $0xd8] sm:$0xff]
          %v727 = vld [vmem:[#allocation2 + $0xe0] sm:$0xff]
          %v728 = vld [vmem:[#allocation2 + $0xe8] sm:$0xff]
          %v729 = vld [vmem:[#allocation2 + $0xf0] sm:$0xff]
          %v730 = vld [vmem:[#allocation2 + $0xf8] sm:$0xff]
          %v731 = vld [vmem:[%s2] sm:$0x1]
          %v733 = vlaneseq
          %v734 = vshrl.u32 %v733, 7
          %v735 = vsub.s32 0, %v734
          %v736 = vrot.slane %v731, %v735
          %v738 = vadd.f32 %v699, %v736
          %v739 = vadd.f32 %v700, %v736
          %v740 = vadd.f32 %v701, %v736
          %v741 = vadd.f32 %v702, %v736
          %v742 = vadd.f32 %v703, %v736
          %v743 = vadd.f32 %v704, %v736
          %v744 = vadd.f32 %v705, %v736
          %v745 = vadd.f32 %v706, %v736
          %v746 = vadd.f32 %v707, %v736
          %v747 = vadd.f32 %v708, %v736
          %v748 = vadd.f32 %v709, %v736
          %v749 = vadd.f32 %v710, %v736
          %v750 = vadd.f32 %v711, %v736
          %v751 = vadd.f32 %v712, %v736
          %v752 = vadd.f32 %v713, %v736
          %v753 = vadd.f32 %v714, %v736
          %v754 = vadd.f32 %v715, %v736
          %v755 = vadd.f32 %v716, %v736
          %v756 = vadd.f32 %v717, %v736
          %v757 = vadd.f32 %v718, %v736
          %v758 = vadd.f32 %v719, %v736
          %v759 = vadd.f32 %v720, %v736
          %v760 = vadd.f32 %v721, %v736
          %v761 = vadd.f32 %v722, %v736
          %v762 = vadd.f32 %v723, %v736
          %v763 = vadd.f32 %v724, %v736
          %v764 = vadd.f32 %v725, %v736
          %v765 = vadd.f32 %v726, %v736
          %v766 = vadd.f32 %v727, %v736
          %v767 = vadd.f32 %v728, %v736
          %v768 = vadd.f32 %v729, %v736
          %v769 = vadd.f32 %v730, %v736
          %vm770 = vcmp.gt.f32.partialorder %v738, 0.0
          %vm771 = vcmp.gt.f32.partialorder %v739, 0.0
          %vm772 = vcmp.gt.f32.partialorder %v740, 0.0
          %vm773 = vcmp.gt.f32.partialorder %v741, 0.0
          %vm774 = vcmp.gt.f32.partialorder %v742, 0.0
          %vm775 = vcmp.gt.f32.partialorder %v743, 0.0
          %vm776 = vcmp.gt.f32.partialorder %v744, 0.0
          %vm777 = vcmp.gt.f32.partialorder %v745, 0.0
          %vm778 = vcmp.gt.f32.partialorder %v746, 0.0
          %vm779 = vcmp.gt.f32.partialorder %v747, 0.0
          %vm780 = vcmp.gt.f32.partialorder %v748, 0.0
          %vm781 = vcmp.gt.f32.partialorder %v749, 0.0
          %vm782 = vcmp.gt.f32.partialorder %v750, 0.0
          %vm783 = vcmp.gt.f32.partialorder %v751, 0.0
          %vm784 = vcmp.gt.f32.partialorder %v752, 0.0
          %vm785 = vcmp.gt.f32.partialorder %v753, 0.0
          %vm786 = vcmp.gt.f32.partialorder %v754, 0.0
          %vm787 = vcmp.gt.f32.partialorder %v755, 0.0
          %vm788 = vcmp.gt.f32.partialorder %v756, 0.0
          %vm789 = vcmp.gt.f32.partialorder %v757, 0.0
          %vm790 = vcmp.gt.f32.partialorder %v758, 0.0
          %vm791 = vcmp.gt.f32.partialorder %v759, 0.0
          %vm792 = vcmp.gt.f32.partialorder %v760, 0.0
          %vm793 = vcmp.gt.f32.partialorder %v761, 0.0
          %vm794 = vcmp.gt.f32.partialorder %v762, 0.0
          %vm795 = vcmp.gt.f32.partialorder %v763, 0.0
          %vm796 = vcmp.gt.f32.partialorder %v764, 0.0
          %vm797 = vcmp.gt.f32.partialorder %v765, 0.0
          %vm798 = vcmp.gt.f32.partialorder %v766, 0.0
          %vm799 = vcmp.gt.f32.partialorder %v767, 0.0
          %vm800 = vcmp.gt.f32.partialorder %v768, 0.0
          %vm801 = vcmp.gt.f32.partialorder %v769, 0.0
          %v802 = vmul.f32 %v738, 0.2
          %v803 = vmul.f32 %v739, 0.2
          %v804 = vmul.f32 %v740, 0.2
          %v805 = vmul.f32 %v741, 0.2
          %v806 = vmul.f32 %v742, 0.2
          %v807 = vmul.f32 %v743, 0.2
          %v808 = vmul.f32 %v744, 0.2
          %v809 = vmul.f32 %v745, 0.2
          %v810 = vmul.f32 %v746, 0.2
          %v811 = vmul.f32 %v747, 0.2
          %v812 = vmul.f32 %v748, 0.2
          %v813 = vmul.f32 %v749, 0.2
          %v814 = vmul.f32 %v750, 0.2
          %v815 = vmul.f32 %v751, 0.2
          %v816 = vmul.f32 %v752, 0.2
          %v817 = vmul.f32 %v753, 0.2
          %v818 = vmul.f32 %v754, 0.2
          %v819 = vmul.f32 %v755, 0.2
          %v820 = vmul.f32 %v756, 0.2
          %v821 = vmul.f32 %v757, 0.2
          %v822 = vmul.f32 %v758, 0.2
          %v823 = vmul.f32 %v759, 0.2
          %v824 = vmul.f32 %v760, 0.2
          %v825 = vmul.f32 %v761, 0.2
          %v826 = vmul.f32 %v762, 0.2
          %v827 = vmul.f32 %v763, 0.2
          %v828 = vmul.f32 %v764, 0.2
          %v829 = vmul.f32 %v765, 0.2
          %v830 = vmul.f32 %v766, 0.2
          %v831 = vmul.f32 %v767, 0.2
          %v832 = vmul.f32 %v768, 0.2
          %v833 = vmul.f32 %v769, 0.2
          %v834 = vsel %vm770, %v738, %v802
          %v835 = vsel %vm771, %v739, %v803
          %v836 = vsel %vm772, %v740, %v804
          %v837 = vsel %vm773, %v741, %v805
          %v838 = vsel %vm774, %v742, %v806
          %v839 = vsel %vm775, %v743, %v807
          %v840 = vsel %vm776, %v744, %v808
          %v841 = vsel %vm777, %v745, %v809
          %v842 = vsel %vm778, %v746, %v810
          %v843 = vsel %vm779, %v747, %v811
          %v844 = vsel %vm780, %v748, %v812
          %v845 = vsel %vm781, %v749, %v813
          %v846 = vsel %vm782, %v750, %v814
          %v847 = vsel %vm783, %v751, %v815
          %v848 = vsel %vm784, %v752, %v816
          %v849 = vsel %vm785, %v753, %v817
          %v850 = vsel %vm786, %v754, %v818
          %v851 = vsel %vm787, %v755, %v819
          %v852 = vsel %vm788, %v756, %v820
          %v853 = vsel %vm789, %v757, %v821
          %v854 = vsel %vm790, %v758, %v822
          %v855 = vsel %vm791, %v759, %v823
          %v856 = vsel %vm792, %v760, %v824
          %v857 = vsel %vm793, %v761, %v825
          %v858 = vsel %vm794, %v762, %v826
          %v859 = vsel %vm795, %v763, %v827
          %v860 = vsel %vm796, %v764, %v828
          %v861 = vsel %vm797, %v765, %v829
          %v862 = vsel %vm798, %v766, %v830
          %v863 = vsel %vm799, %v767, %v831
          %v864 = vsel %vm800, %v768, %v832
          %v865 = vsel %vm801, %v769, %v833
          %866 = vst [vmem:[%s200] sm:$0xff] %v834
          %867 = vst [vmem:[%s200 + $0x8] sm:$0xff] %v835
          %868 = vst [vmem:[%s200 + $0x10] sm:$0xff] %v836
          %869 = vst [vmem:[%s200 + $0x18] sm:$0xff] %v837
          %870 = vst [vmem:[%s200 + $0x20] sm:$0xff] %v838
          %871 = vst [vmem:[%s200 + $0x28] sm:$0xff] %v839
          %872 = vst [vmem:[%s200 + $0x30] sm:$0xff] %v840
          %873 = vst [vmem:[%s200 + $0x38] sm:$0xff] %v841
          %874 = vst [vmem:[%s200 + $0x40] sm:$0xff] %v842
          %875 = vst [vmem:[%s200 + $0x48] sm:$0xff] %v843
          %876 = vst [vmem:[%s200 + $0x50] sm:$0xff] %v844
          %877 = vst [vmem:[%s200 + $0x58] sm:$0xff] %v845
          %878 = vst [vmem:[%s200 + $0x60] sm:$0xff] %v846
          %879 = vst [vmem:[%s200 + $0x68] sm:$0xff] %v847
          %880 = vst [vmem:[%s200 + $0x70] sm:$0xff] %v848
          %881 = vst [vmem:[%s200 + $0x78] sm:$0xff] %v849
          %882 = vst [vmem:[%s200 + $0x80] sm:$0xff] %v850
          %883 = vst [vmem:[%s200 + $0x88] sm:$0xff] %v851
          %884 = vst [vmem:[%s200 + $0x90] sm:$0xff] %v852
          %885 = vst [vmem:[%s200 + $0x98] sm:$0xff] %v853
          %886 = vst [vmem:[%s200 + $0xa0] sm:$0xff] %v854
          %887 = vst [vmem:[%s200 + $0xa8] sm:$0xff] %v855
          %888 = vst [vmem:[%s200 + $0xb0] sm:$0xff] %v856
          %889 = vst [vmem:[%s200 + $0xb8] sm:$0xff] %v857
          %890 = vst [vmem:[%s200 + $0xc0] sm:$0xff] %v858
          %891 = vst [vmem:[%s200 + $0xc8] sm:$0xff] %v859
          %892 = vst [vmem:[%s200 + $0xd0] sm:$0xff] %v860
          %893 = vst [vmem:[%s200 + $0xd8] sm:$0xff] %v861
          %894 = vst [vmem:[%s200 + $0xe0] sm:$0xff] %v862
          %895 = vst [vmem:[%s200 + $0xe8] sm:$0xff] %v863
          %896 = vst [vmem:[%s200 + $0xf0] sm:$0xff] %v864
          %897 = vst [vmem:[%s200 + $0xf8] sm:$0xff] %v865
        $region40: #{tpu_custom_call.1} parent=31 // pred_fallthru
          _
        %s898 = sand.u32 %s112, 1
        %s899 = scalar_lea.sflag [#allocation4], %s898
        %s900 = sand.u32 %s112, 1
        %s901 = smul.addr %s900, 256
        %s902 = scalar_lea.vmem [#allocation3], %s901
        // Predicated region
        $region41: #{tpu_custom_call.1} parent=31 // pred_check
          %p903 = pneg %p122
        $region42: #{tpu_custom_call.1} parent=31 // pred_check_branch
          %905 = sbr.rel (%p903) target = $region44
        $region43: #{tpu_custom_call.1} parent=31 // pred_region
          %s906 = smul.u32 32, %s21
          %s908 = ssub.s32 4096, 4096
          %909 = vsyncadd %s899, %s908
          %s910 = smul.addr %s906, 128
          %s911 = scalar_lea.hbm %s3, %s910
          %s912 = sshll.u32 %s902, 4
          %s913 = int_to_ptr.vmem [resolvable:$true] %s912
          %918 = dma.vmem_to_hbm [thread:$0]  %s913, 4096, %s911, %s899, 128, 128, 8
        $region44: #{tpu_custom_call.1} parent=31 // pred_fallthru
          _
      $region32: #{tpu_custom_call.1} parent=5 // pred_fallthru
        _
      %p919 = scmp.le.s32.totalorder 2, %s12
      // Predicated region
      $region45: #{tpu_custom_call.1} parent=5 // pred_check
        %p920 = pneg %p919
      $region46: #{tpu_custom_call.1} parent=5 // pred_check_branch
        %922 = sbr.rel (%p920) target = $region48
      $region47: #{tpu_custom_call.1} parent=5 // pred_region
        %s923 = ssub.s32 %s12, 2
        // Predicated region
        $region49: #{tpu_custom_call.1} parent=47 // pred_check
          %p924 = pneg %p128
        $region50: #{tpu_custom_call.1} parent=47 // pred_check_branch
          %926 = sbr.rel (%p924) target = $region52
        $region51: #{tpu_custom_call.1} parent=47 // pred_region
          %s927 = sand.u32 %s113, 1
          %s928 = scalar_lea.sflag [#allocation4], %s927
          %s929 = sand.u32 %s113, 1
          %s930 = smul.addr %s929, 256
          %s931 = scalar_lea.vmem [#allocation3], %s930
          %932 = dma.done %s928, 4096
        $region52: #{tpu_custom_call.1} parent=47 // pred_fallthru
          _
      $region48: #{tpu_custom_call.1} parent=5 // pred_fallthru
        _
    $region6: #{tpu_custom_call.1} parent=1 // loop_footer
      %s16 = sadd.s32 1, %s12
    $region7: #{tpu_custom_call.1} parent=1 // loop_footer_branch
      %11 = sbr.rel target = $region3
    $region8: #{tpu_custom_call.1} parent=1 // loop_exit
      _
    %933 = vsyncpa [#allocation4], 1
    %s934 = scalar_lea.sflag [#allocation4], 1
    %935 = vsyncpa %s934, 1

</llo_original>
